<compile_context>
chip_gen: v6e
topology: v6e:2x2x1
jax: 0.10.0
libtpu: 0.0.40
codegen_flags: <defaults>
</compile_context>

<pallas_src>
import functools

import jax
import jax.numpy as jnp
from jax.experimental import pallas as pl
from jax.experimental.pallas import tpu as pltpu


# --------------------------------------------------------------------------
# Roll-convention probe: pltpu.roll is expected to match jnp.roll
# (out[i] = x[(i - shift) % n]).  Probe once at runtime to lock the sign.
# --------------------------------------------------------------------------
_ROLL_SIGN = None


def _pltpu_roll_sign():
    global _ROLL_SIGN
    if _ROLL_SIGN is None:
        def probe(x_ref, o_ref):
            o_ref[...] = pltpu.roll(x_ref[...], 1, axis=1)

        x = jax.lax.broadcasted_iota(jnp.float32, (8, 128), 1)
        y = pl.pallas_call(
            probe, out_shape=jax.ShapeDtypeStruct((8, 128), jnp.float32)
        )(x)
        _ROLL_SIGN = 1 if float(y[0, 0]) == 127.0 else -1
    return _ROLL_SIGN


# --------------------------------------------------------------------------
# Kernel: barrel-shifter circular shear of a (block_rows, W) slab.
# --------------------------------------------------------------------------
def _shear_kernel(x_ref, shift_ref, o_ref, *, n_bits):
    """out[r, w] = x[r, (w - shift[r]) % W] via log2(W) roll+select stages."""
    y = x_ref[...]                       # (block_rows, W), original dtype
    s = shift_ref[...]                   # (block_rows, 1) int32 in [0, W)
    for k in range(n_bits):
        rolled = pltpu.roll(y, 1 << k, axis=1)      # XLU rotation, static shift
        take = ((s >> k) & 1) == 1                  # per-row bit of the shift
        y = jnp.where(take, rolled, y)              # lane-broadcast select (VPU)
    o_ref[...] = y


def _pick_tile_nc(nc, h, w, itemsize, target_bytes=2 * 1024 * 1024):
    """(H, W) slices per block: as many as fit ~target_bytes, sublane-aligned
    rows, and >= 2 grid steps when possible (TensorCore sharding on v7x)."""
    slice_bytes = h * w * itemsize
    candidates = [
        d for d in range(1, nc + 1)
        if nc % d == 0 and (d * h) % 8 == 0 and d * slice_bytes <= target_bytes
    ]
    if not candidates:
        return nc                        # single block spanning everything
    multi_step = [d for d in candidates if nc // d >= 2]
    return max(multi_step) if multi_step else max(candidates)


@functools.partial(jax.jit, static_argnames=("roll_sign",))
def _shear_pallas(x, shear, *, roll_sign):
    N, C, H, W = x.shape
    nc = N * C

    # Per-row shift, reduced mod W — plain XLA ops on traced data, so a new
    # shear value never triggers a retrace/recompile of the kernel.
    h = jnp.arange(H, dtype=jnp.float32)
    raw = jnp.round(shear * (h - jnp.float32(H // 2))).astype(jnp.int32)   # (H,)
    shifts = (roll_sign * raw) % W                                          # [0, W)
    shift_rows = jnp.tile(shifts[:, None], (nc, 1))                         # (nc*H, 1)

    x2 = x.reshape(nc * H, W)

    tile_nc = _pick_tile_nc(nc, H, W, x.dtype.itemsize)
    block_rows = tile_nc * H
    n_bits = max(1, (W - 1).bit_length())

    out2 = pl.pallas_call(
        functools.partial(_shear_kernel, n_bits=n_bits),
        out_shape=jax.ShapeDtypeStruct((nc * H, W), x.dtype),
        grid=(nc // tile_nc,),
        in_specs=[
            pl.BlockSpec((block_rows, W), lambda i: (i, 0)),
            pl.BlockSpec((block_rows, 1), lambda i: (i, 0)),
        ],
        out_specs=pl.BlockSpec((block_rows, W), lambda i: (i, 0)),
        compiler_params=pltpu.CompilerParams(
            dimension_semantics=("parallel",),
            vmem_limit_bytes=48 * 1024 * 1024,
        ),
    )(x2, shift_rows)
    return out2.reshape(N, C, H, W)


def shear_fibers(x, shear_range, *, key=None):
    """Pallas-backed shear augmentation for NCHW inputs."""
    if key is None:
        # TODO(synk): PyTorch draws a fresh random shear per forward call; here
        # the caller supplies a key (default key => deterministic shear).
        key = jax.random.PRNGKey(0)
    shear = jax.random.uniform(
        key, (), dtype=jnp.float32, minval=-shear_range, maxval=shear_range
    )
    return _shear_pallas(x, shear, roll_sign=_pltpu_roll_sign())


class Shear:
    """JAX/Pallas equivalent of the PyTorch `Shear` module."""

    def __init__(self, shear_range):
        self.shear_range = shear_range
        self.shear = shear_fibers

    def __call__(self, x, *, key=None):
        return self.shear(x, self.shear_range, key=key)


def _shear_reference(x, shear):
    """Pure-JAX reference: out[..., h, w] = x[..., h, (w - s_h) % W]."""
    N, C, H, W = x.shape
    h = jnp.arange(H, dtype=jnp.float32)
    shifts = jnp.round(shear * (h - jnp.float32(H // 2))).astype(jnp.int32)  # (H,)
    w = jnp.arange(W)
    src = (w[None, :] - shifts[:, None]) % W                                 # (H, W)
    src = jnp.broadcast_to(src[None, None], x.shape)
    return jnp.take_along_axis(x, src, axis=-1)


if __name__ == "__main__":
    key = jax.random.PRNGKey(0)
    k_x, k_shear = jax.random.split(key)

    N, C, H, W = 2, 4, 16, 16
    x = jax.random.normal(k_x, (N, C, H, W), dtype=jnp.float32)

    shear_range = 0.3
    module = Shear(shear_range)

    out = module(x, key=k_shear)
    out = jax.block_until_ready(out)

    # Verify against a pure-JAX reference using the identical shear draw.
    shear_val = jax.random.uniform(
        k_shear, (), dtype=jnp.float32, minval=-shear_range, maxval=shear_range
    )
    ref = _shear_reference(x, shear_val)

    assert out.shape == x.shape and out.dtype == x.dtype
    assert jnp.allclose(out, ref), "Pallas shear does not match reference"

    print("KERNEL_OK")
</pallas_src>

<mosaic_0001>
module attributes {stable_mosaic.version = 11 : i64} {
  func.func @probe(%arg0: memref<8x128xf32, #tpu.memory_space<vmem>>, %arg1: memref<8x128xf32, #tpu.memory_space<vmem>>) attributes {dimension_semantics = [], scalar_prefetch = 0 : i64, scratch_operands = 0 : i64, tpu.core_type = #tpu.core_type<tc>} {
    %c0 = arith.constant 0 : index
    %c0_0 = arith.constant 0 : index
    %0 = vector.load %arg0[%c0, %c0_0] : memref<8x128xf32, #tpu.memory_space<vmem>>, vector<8x128xf32>
    %c1_i32 = arith.constant 1 : i32
    %1 = tpu.dynamic_rotate %0 by %c1_i32 dim 1 : vector<8x128xf32>, i32 -> vector<8x128xf32>
    %c0_1 = arith.constant 0 : index
    %c0_2 = arith.constant 0 : index
    %2 = vector.load %arg1[%c0_1, %c0_2] : memref<8x128xf32, #tpu.memory_space<vmem>>, vector<8x128xf32>
    tpu.vector_store %arg1[%c0_1, %c0_2], %1 {strides = array<i32>} : memref<8x128xf32, #tpu.memory_space<vmem>>, vector<8x128xf32>,
    return
  }
}

</mosaic_0001>

<llo_original>
// kernel: tpu_custom_call.1
$region0: #{tpu_custom_call.1}
  #allocation0 [shape = 'u32[]', space=smem, size = 0x4, offset = 0x4, fixed_abs, tag = 'smem constant byte address 0x4 - core index']
  #allocation1 [shape = 'u32[144,128]{1,0:T(1,128)}', space=vmem, size = 0x12000, scoped, tag = 'internal scratch']
  %s0 = inlined_call_operand.hbm [shape: f32[8,128], index: 0, kind: input, shape index: {}]
  %s1 = inlined_call_operand.hbm [shape: f32[8,128], index: 1, kind: output, shape index: {}]
  %s2 = sld [smem:[#allocation0]]
  $region18: #{tpu_custom_call.1} parent=0
    _
  %s4 = ssub.s32 1, %s2
  %s5 = scalar_select 0, %s4, %s2
  $region1: #{tpu_custom_call.1} parent=0
    #allocation2 [shape = 'u8[4096]{0}', space=vmem, size = 0x1000, scoped, tag = 'input window, operand 0, single buffered']
    #allocation3 [shape = 's32[1]{0}', space=sflag, size = 0x4, scoped, tag = 'scoped memory for tpu_custom_call.1']
    #allocation4 [shape = 's32[1]{0}', space=sflag, size = 0x4, scoped, tag = 'scoped memory for tpu_custom_call.1']
    #allocation5 [shape = 'u8[4096]{0}', space=vmem, size = 0x1000, scoped, tag = 'output window, operand 0, single buffered']
    %6 = vsyncpa [#allocation3], 0
    %7 = vsyncpa [#allocation4], 0
    // Predicated region
    $region2: #{tpu_custom_call.1} parent=1 // pred_check
      _
    $region3: #{tpu_custom_call.1} parent=1 // pred_check_branch
      %9 = sbr.rel (0) target = $region5
    $region4: #{tpu_custom_call.1} parent=1 // pred_region
      %s11 = ssub.s32 128, 128
      %12 = vsyncadd [#allocation3], %s11
      %s14 = sshll.u32 [#allocation2], 4
      %s15 = int_to_ptr.vmem [resolvable:$true] %s14
      %17 = dma.hbm_to_vmem [thread:$0]  %s0, 128, %s15, [#allocation3]
    $region5: #{tpu_custom_call.1} parent=1 // pred_fallthru
      _
    // Predicated region
    $region6: #{tpu_custom_call.1} parent=1 // pred_check
      _
    $region7: #{tpu_custom_call.1} parent=1 // pred_check_branch
      %19 = sbr.rel (0) target = $region9
    $region8: #{tpu_custom_call.1} parent=1 // pred_region
      %20 = dma.done [#allocation3], 128
    $region9: #{tpu_custom_call.1} parent=1 // pred_fallthru
      _
    %v21 = vld [vmem:[#allocation2] sm:$0xff]
    %22 = vrot.lane.b32.xlu0 %v21, 1
    %v23 = vpop.permute.xlu0 %22
    %24 = vst [vmem:[#allocation5] sm:$0xff] %v23
    // Predicated region
    $region10: #{tpu_custom_call.1} parent=1 // pred_check
      _
    $region11: #{tpu_custom_call.1} parent=1 // pred_check_branch
      %26 = sbr.rel (0) target = $region13
    $region12: #{tpu_custom_call.1} parent=1 // pred_region
      %s28 = ssub.s32 128, 128
      %29 = vsyncadd [#allocation4], %s28
      %s31 = sshll.u32 [#allocation5], 4
      %s32 = int_to_ptr.vmem [resolvable:$true] %s31
      %34 = dma.vmem_to_hbm [thread:$0]  %s32, 128, %s1, [#allocation4]
    $region13: #{tpu_custom_call.1} parent=1 // pred_fallthru
      _
    // Predicated region
    $region14: #{tpu_custom_call.1} parent=1 // pred_check
      _
    $region15: #{tpu_custom_call.1} parent=1 // pred_check_branch
      %36 = sbr.rel (0) target = $region17
    $region16: #{tpu_custom_call.1} parent=1 // pred_region
      %37 = dma.done [#allocation4], 128
    $region17: #{tpu_custom_call.1} parent=1 // pred_fallthru
      _
    %38 = vsyncpa [#allocation3], 1
    %39 = vsyncpa [#allocation4], 1

</llo_original>
